<compile_context>
chip_gen: v7x
topology: tpu7x:2x2x1
jax: 0.10.0
libtpu: 0.0.40
codegen_flags: <defaults>
</compile_context>

<pallas_src>
from functools import partial

import jax
import jax.numpy as jnp
from jax import lax
from jax.experimental import pallas as pl
from jax.experimental.pallas import tpu as pltpu


def brain_kernel(x_ref, mask_ref, bias_ref,
                 w1_ref, b1_ref, wf_ref, bf_ref,
                 wo_ref, bo_ref, wqn_ref, bqn_ref,
                 q_out_ref, p_out_ref, *, din, hidden):
    x = x_ref[...]            # (R, din)   R = Bt * N rows of this batch chunk
    mask = mask_ref[...]      # (R, R)     block-diagonal multiplicative mask
    bias = bias_ref[...]      # (R, R)     precomputed -9e15 * (1 - mask)

    # ---- Encoder fc1 + ReLU ----
    h1 = jnp.maximum(
        jnp.dot(x, w1_ref[...], preferred_element_type=jnp.float32) + b1_ref[...],
        0.0)

    # ---- Fused projections: [ fc2 | fcv | fcq | fck ] in one MXU push ----
    fused = jnp.dot(h1, wf_ref[...], preferred_element_type=jnp.float32) + bf_ref[...]
    p = fused[:, :din]                                        # encoder pred (no relu)
    v = jnp.maximum(fused[:, din:din + hidden], 0.0)
    qh = jnp.maximum(fused[:, din + hidden:din + 2 * hidden], 0.0)
    kh = jnp.maximum(fused[:, din + 2 * hidden:din + 3 * hidden], 0.0)

    # ---- Block-diagonal attention over the batch chunk ----
    # scores[i, j] = sum_d qh[i, d] * kh[j, d]   (no explicit transpose)
    scores = lax.dot_general(qh, kh, (((1,), (1,)), ((), ())),
                             preferred_element_type=jnp.float32)
    scores = scores * mask + bias                 # == scores*mask - 9e15*(1-mask)

    m = jnp.max(scores, axis=-1, keepdims=True)
    e = jnp.exp(scores - m)
    att = e / jnp.sum(e, axis=-1, keepdims=True)

    out = jnp.dot(att, v, preferred_element_type=jnp.float32)
    out = jnp.maximum(
        jnp.dot(out, wo_ref[...], preferred_element_type=jnp.float32) + bo_ref[...],
        0.0)

    # ---- Q_Net ----
    q = jnp.dot(out, wqn_ref[...], preferred_element_type=jnp.float32) + bqn_ref[...]

    q_out_ref[...] = q
    p_out_ref[...] = p


def brain_forward(x, mask, params, block_batch=None):
    """x: (B, N, din) f32, mask: (B, N, N) f32 -> (q: (B,N,actions), p: (B,N,din))."""
    f32 = jnp.float32
    B, N, din = x.shape
    hidden = params["w1"].shape[1]
    num_actions = params["wqn"].shape[1]

    # Fuse the four h1-consuming projections once in the wrapper.
    wf = jnp.concatenate([params["w2"], params["wv"], params["wq"], params["wk"]], axis=1)
    bf = jnp.concatenate([params["b2"], params["bv"], params["bq"], params["bk"]], axis=1)

    # Batch-chunk size: target ~128 rows per grid step.
    Bt = block_batch if block_batch is not None else max(1, 128 // N)
    Bt = max(1, min(Bt, B))
    if (Bt * N) % 8 != 0 and Bt < B:
        Bt = B  # fall back to a single step so block dims equal full array dims
    G = pl.cdiv(B, Bt)
    B_pad = G * Bt
    R = Bt * N

    x_p = x.astype(f32)
    mask_p = mask.astype(f32)
    if B_pad != B:
        pad = B_pad - B
        x_p = jnp.concatenate([x_p, jnp.zeros((pad, N, din), f32)], axis=0)
        eye = jnp.broadcast_to(jnp.eye(N, dtype=f32), (pad, N, N))
        mask_p = jnp.concatenate([mask_p, eye], axis=0)  # keep softmax well-defined

    # Flatten batch*agent rows for lane/sublane-dense tiles.
    x2d = x_p.reshape(B_pad * N, din)

    # Block-diagonal mask per chunk: (G, Bt*N, Bt*N), off-diagonal blocks = 0.
    m4 = mask_p.reshape(G, Bt, N, N)
    eye_bt = jnp.eye(Bt, dtype=f32)
    big_mask = (eye_bt[None, :, None, :, None] * m4[:, :, :, None, :]).reshape(G * R, R)
    big_bias = (-9000000000000000.0) * (1.0 - big_mask)

    kernel = partial(brain_kernel, din=din, hidden=hidden)

    weight_spec = lambda shape: pl.BlockSpec(shape, lambda g: (0, 0))

    q2d, p2d = pl.pallas_call(
        kernel,
        out_shape=[
            jax.ShapeDtypeStruct((B_pad * N, num_actions), f32),
            jax.ShapeDtypeStruct((B_pad * N, din), f32),
        ],
        grid=(G,),
        in_specs=[
            pl.BlockSpec((R, din), lambda g: (g, 0)),          # x rows for this chunk
            pl.BlockSpec((R, R), lambda g: (g, 0)),            # block-diag mask
            pl.BlockSpec((R, R), lambda g: (g, 0)),            # additive bias
            weight_spec((din, hidden)), weight_spec((1, hidden)),                    # fc1
            weight_spec((hidden, din + 3 * hidden)), weight_spec((1, din + 3 * hidden)),  # fused
            weight_spec((hidden, hidden)), weight_spec((1, hidden)),                 # fcout
            weight_spec((hidden, num_actions)), weight_spec((1, num_actions)),       # q_net
        ],
        out_specs=[
            pl.BlockSpec((R, num_actions), lambda g: (g, 0)),
            pl.BlockSpec((R, din), lambda g: (g, 0)),
        ],
        compiler_params=pltpu.CompilerParams(
            dimension_semantics=("parallel",)),
    )(x2d, big_mask, big_bias,
      params["w1"], params["b1"], wf, bf,
      params["wo"], params["bo"], params["wqn"], params["bqn"])

    q = q2d.reshape(B_pad, N, num_actions)[:B]
    p = p2d.reshape(B_pad, N, din)[:B]
    return q, p


def init_params(key, num_inputs, hidden_dim, num_actions):
    """Deterministic synthetic init. Weights stored as (in, out); biases (1, out)."""
    keys = jax.random.split(key, 16)

    def lin(kw, kb, din, dout):
        scale = 1.0 / jnp.sqrt(din)
        w = jax.random.uniform(kw, (din, dout), jnp.float32, -scale, scale)
        b = jax.random.uniform(kb, (1, dout), jnp.float32, -scale, scale)
        return w, b

    p = {}
    p["w1"], p["b1"] = lin(keys[0], keys[1], num_inputs, hidden_dim)    # encoder.fc1
    p["w2"], p["b2"] = lin(keys[2], keys[3], hidden_dim, num_inputs)    # encoder.fc2
    p["wv"], p["bv"] = lin(keys[4], keys[5], hidden_dim, hidden_dim)    # att.fcv
    p["wq"], p["bq"] = lin(keys[6], keys[7], hidden_dim, hidden_dim)    # att.fcq
    p["wk"], p["bk"] = lin(keys[8], keys[9], hidden_dim, hidden_dim)    # att.fck
    p["wo"], p["bo"] = lin(keys[10], keys[11], hidden_dim, hidden_dim)  # att.fcout
    p["wqn"], p["bqn"] = lin(keys[12], keys[13], hidden_dim, num_actions)  # q_net.fc1
    return p


def brain_reference(x, mask, p):
    """Pure-JAX reference mirroring the PyTorch forward."""
    relu = lambda t: jnp.maximum(t, 0.0)
    h1 = relu(x @ p["w1"] + p["b1"])
    pred = h1 @ p["w2"] + p["b2"]
    v = relu(h1 @ p["wv"] + p["bv"])
    q = relu(h1 @ p["wq"] + p["bq"])
    k = relu(h1 @ p["wk"] + p["bk"])
    scores = jnp.einsum("bnd,bmd->bnm", q, k)
    scores = scores * mask - 9000000000000000.0 * (1.0 - mask)
    att = jax.nn.softmax(scores, axis=2)
    out = relu(jnp.einsum("bnm,bmd->bnd", att, v) @ p["wo"] + p["bo"])
    return out @ p["wqn"] + p["bqn"], pred


if __name__ == "__main__":
    B, N = 2, 8                 # batch, n_agent
    num_inputs = 32             # din
    hidden_dim = 32
    num_actions = 4

    key = jax.random.PRNGKey(0)
    kx, kmask, kparams = jax.random.split(key, 3)

    x = jax.random.normal(kx, (B, N, num_inputs), jnp.float32)
    # binary adjacency mask with self-connections (typical DGN usage)
    mask = (jax.random.uniform(kmask, (B, N, N)) > 0.5).astype(jnp.float32)
    mask = jnp.maximum(mask, jnp.eye(N, dtype=jnp.float32)[None])

    params = init_params(kparams, num_inputs, hidden_dim, num_actions)

    q_out, p_out = brain_forward(x, mask, params)
    q_out = jax.block_until_ready(q_out)
    p_out = jax.block_until_ready(p_out)

    q_ref, p_ref = brain_reference(x, mask, params)
    assert jnp.allclose(q_out, q_ref, atol=1e-4, rtol=1e-4)
    assert jnp.allclose(p_out, p_ref, atol=1e-4, rtol=1e-4)

    print("KERNEL_OK")
</pallas_src>

<mosaic_0001>
module attributes {stable_mosaic.version = 11 : i64} {
  func.func @brain_kernel(%arg0: i32, %arg1: memref<16x32xf32, #tpu.memory_space<vmem>>, %arg2: memref<16x16xf32, #tpu.memory_space<vmem>>, %arg3: memref<16x16xf32, #tpu.memory_space<vmem>>, %arg4: memref<32x32xf32, #tpu.memory_space<vmem>>, %arg5: memref<1x32xf32, #tpu.memory_space<vmem>>, %arg6: memref<32x128xf32, #tpu.memory_space<vmem>>, %arg7: memref<1x128xf32, #tpu.memory_space<vmem>>, %arg8: memref<32x32xf32, #tpu.memory_space<vmem>>, %arg9: memref<1x32xf32, #tpu.memory_space<vmem>>, %arg10: memref<32x4xf32, #tpu.memory_space<vmem>>, %arg11: memref<1x4xf32, #tpu.memory_space<vmem>>, %arg12: memref<16x4xf32, #tpu.memory_space<vmem>>, %arg13: memref<16x32xf32, #tpu.memory_space<vmem>>) attributes {dimension_semantics = [#tpu.dimension_semantics<parallel>], iteration_bounds = array<i64: 1>, scalar_prefetch = 0 : i64, scratch_operands = 0 : i64, tpu.core_type = #tpu.core_type<tc>, window_params = [{transform_indices = @transform_0, window_bounds = array<i64: 16, 32>}, {transform_indices = @transform_1, window_bounds = array<i64: 16, 16>}, {transform_indices = @transform_2, window_bounds = array<i64: 16, 16>}, {pipeline_mode = #tpu.pipeline_mode<synchronous>, transform_indices = @transform_3, window_bounds = array<i64: 32, 32>}, {pipeline_mode = #tpu.pipeline_mode<synchronous>, transform_indices = @transform_4, window_bounds = array<i64: 1, 32>}, {pipeline_mode = #tpu.pipeline_mode<synchronous>, transform_indices = @transform_5, window_bounds = array<i64: 32, 128>}, {pipeline_mode = #tpu.pipeline_mode<synchronous>, transform_indices = @transform_6, window_bounds = array<i64: 1, 128>}, {pipeline_mode = #tpu.pipeline_mode<synchronous>, transform_indices = @transform_7, window_bounds = array<i64: 32, 32>}, {pipeline_mode = #tpu.pipeline_mode<synchronous>, transform_indices = @transform_8, window_bounds = array<i64: 1, 32>}, {pipeline_mode = #tpu.pipeline_mode<synchronous>, transform_indices = @transform_9, window_bounds = array<i64: 32, 4>}, {pipeline_mode = #tpu.pipeline_mode<synchronous>, transform_indices = @transform_10, window_bounds = array<i64: 1, 4>}, {transform_indices = @transform_11, window_bounds = array<i64: 16, 4>}, {transform_indices = @transform_12, window_bounds = array<i64: 16, 32>}]} {
    %c0 = arith.constant 0 : index
    %c0_0 = arith.constant 0 : index
    %0 = vector.load %arg1[%c0, %c0_0] : memref<16x32xf32, #tpu.memory_space<vmem>>, vector<16x32xf32>
    %c0_1 = arith.constant 0 : index
    %c0_2 = arith.constant 0 : index
    %1 = vector.load %arg2[%c0_1, %c0_2] : memref<16x16xf32, #tpu.memory_space<vmem>>, vector<16x16xf32>
    %c0_3 = arith.constant 0 : index
    %c0_4 = arith.constant 0 : index
    %2 = vector.load %arg3[%c0_3, %c0_4] : memref<16x16xf32, #tpu.memory_space<vmem>>, vector<16x16xf32>
    %c0_5 = arith.constant 0 : index
    %c0_6 = arith.constant 0 : index
    %3 = vector.load %arg4[%c0_5, %c0_6] : memref<32x32xf32, #tpu.memory_space<vmem>>, vector<32x32xf32>
    %cst = arith.constant dense<0.000000e+00> : vector<16x32xf32>
    %4 = tpu.matmul %0, %3, %cst {dimension_numbers = #tpu.dot_dimension_numbers<[1], [0], [0], [1], [0, 0, 1, 1], [], []>} : vector<16x32xf32>, vector<32x32xf32>, vector<16x32xf32> -> vector<16x32xf32>
    %c0_7 = arith.constant 0 : index
    %c0_8 = arith.constant 0 : index
    %5 = vector.load %arg5[%c0_7, %c0_8] : memref<1x32xf32, #tpu.memory_space<vmem>>, vector<1x32xf32>
    %6 = vector.broadcast %5 : vector<1x32xf32> to vector<16x32xf32>
    %7 = arith.addf %4, %6 : vector<16x32xf32>
    %cst_9 = arith.constant 0.000000e+00 : f32
    %8 = vector.broadcast %cst_9 : f32 to vector<16x32xf32>
    %9 = arith.maximumf %7, %8 : vector<16x32xf32>
    %c0_10 = arith.constant 0 : index
    %c0_11 = arith.constant 0 : index
    %10 = vector.load %arg6[%c0_10, %c0_11] : memref<32x128xf32, #tpu.memory_space<vmem>>, vector<32x128xf32>
    %cst_12 = arith.constant dense<0.000000e+00> : vector<16x128xf32>
    %11 = tpu.matmul %9, %10, %cst_12 {dimension_numbers = #tpu.dot_dimension_numbers<[1], [0], [0], [1], [0, 0, 1, 1], [], []>} : vector<16x32xf32>, vector<32x128xf32>, vector<16x128xf32> -> vector<16x128xf32>
    %c0_13 = arith.constant 0 : index
    %c0_14 = arith.constant 0 : index
    %12 = vector.load %arg7[%c0_13, %c0_14] : memref<1x128xf32, #tpu.memory_space<vmem>>, vector<1x128xf32>
    %13 = vector.broadcast %12 : vector<1x128xf32> to vector<16x128xf32>
    %14 = arith.addf %11, %13 : vector<16x128xf32>
    %15 = vector.extract_strided_slice %14 {offsets = [0, 0], sizes = [16, 32], strides = [1, 1]} : vector<16x128xf32> to vector<16x32xf32>
    %16 = vector.extract_strided_slice %14 {offsets = [0, 32], sizes = [16, 32], strides = [1, 1]} : vector<16x128xf32> to vector<16x32xf32>
    %cst_15 = arith.constant 0.000000e+00 : f32
    %17 = vector.broadcast %cst_15 : f32 to vector<16x32xf32>
    %18 = arith.maximumf %16, %17 : vector<16x32xf32>
    %19 = vector.extract_strided_slice %14 {offsets = [0, 64], sizes = [16, 32], strides = [1, 1]} : vector<16x128xf32> to vector<16x32xf32>
    %cst_16 = arith.constant 0.000000e+00 : f32
    %20 = vector.broadcast %cst_16 : f32 to vector<16x32xf32>
    %21 = arith.maximumf %19, %20 : vector<16x32xf32>
    %22 = vector.extract_strided_slice %14 {offsets = [0, 96], sizes = [16, 32], strides = [1, 1]} : vector<16x128xf32> to vector<16x32xf32>
    %cst_17 = arith.constant 0.000000e+00 : f32
    %23 = vector.broadcast %cst_17 : f32 to vector<16x32xf32>
    %24 = arith.maximumf %22, %23 : vector<16x32xf32>
    %cst_18 = arith.constant dense<0.000000e+00> : vector<16x16xf32>
    %25 = tpu.matmul %21, %24, %cst_18 {dimension_numbers = #tpu.dot_dimension_numbers<[1], [1], [0], [0], [0, 0, 1, 0], [], []>} : vector<16x32xf32>, vector<16x32xf32>, vector<16x16xf32> -> vector<16x16xf32>
    %26 = arith.mulf %25, %1 : vector<16x16xf32>
    %27 = arith.addf %26, %2 : vector<16x16xf32>
    %cst_19 = arith.constant dense<0xFF800000> : vector<16xf32>
    %28 = vector.multi_reduction <maximumf>, %27, %cst_19 [1] : vector<16x16xf32> to vector<16xf32>
    %29 = vector.shape_cast %28 : vector<16xf32> to vector<16x1xf32>
    %30 = vector.broadcast %29 : vector<16x1xf32> to vector<16x16xf32>
    %31 = arith.subf %27, %30 : vector<16x16xf32>
    %32 = math.exp %31 : vector<16x16xf32>
    %cst_20 = arith.constant dense<0.000000e+00> : vector<16xf32>
    %33 = vector.multi_reduction <add>, %32, %cst_20 [1] : vector<16x16xf32> to vector<16xf32>
    %34 = vector.shape_cast %33 : vector<16xf32> to vector<16x1xf32>
    %35 = vector.broadcast %34 : vector<16x1xf32> to vector<16x16xf32>
    %36 = arith.divf %32, %35 : vector<16x16xf32>
    %cst_21 = arith.constant dense<0.000000e+00> : vector<16x32xf32>
    %37 = tpu.matmul %36, %18, %cst_21 {dimension_numbers = #tpu.dot_dimension_numbers<[1], [0], [0], [1], [0, 0, 1, 1], [], []>} : vector<16x16xf32>, vector<16x32xf32>, vector<16x32xf32> -> vector<16x32xf32>
    %c0_22 = arith.constant 0 : index
    %c0_23 = arith.constant 0 : index
    %38 = vector.load %arg8[%c0_22, %c0_23] : memref<32x32xf32, #tpu.memory_space<vmem>>, vector<32x32xf32>
    %cst_24 = arith.constant dense<0.000000e+00> : vector<16x32xf32>
    %39 = tpu.matmul %37, %38, %cst_24 {dimension_numbers = #tpu.dot_dimension_numbers<[1], [0], [0], [1], [0, 0, 1, 1], [], []>} : vector<16x32xf32>, vector<32x32xf32>, vector<16x32xf32> -> vector<16x32xf32>
    %c0_25 = arith.constant 0 : index
    %c0_26 = arith.constant 0 : index
    %40 = vector.load %arg9[%c0_25, %c0_26] : memref<1x32xf32, #tpu.memory_space<vmem>>, vector<1x32xf32>
    %41 = vector.broadcast %40 : vector<1x32xf32> to vector<16x32xf32>
    %42 = arith.addf %39, %41 : vector<16x32xf32>
    %cst_27 = arith.constant 0.000000e+00 : f32
    %43 = vector.broadcast %cst_27 : f32 to vector<16x32xf32>
    %44 = arith.maximumf %42, %43 : vector<16x32xf32>
    %c0_28 = arith.constant 0 : index
    %c0_29 = arith.constant 0 : index
    %45 = vector.load %arg10[%c0_28, %c0_29] : memref<32x4xf32, #tpu.memory_space<vmem>>, vector<32x4xf32>
    %cst_30 = arith.constant dense<0.000000e+00> : vector<16x4xf32>
    %46 = tpu.matmul %44, %45, %cst_30 {dimension_numbers = #tpu.dot_dimension_numbers<[1], [0], [0], [1], [0, 0, 1, 1], [], []>} : vector<16x32xf32>, vector<32x4xf32>, vector<16x4xf32> -> vector<16x4xf32>
    %c0_31 = arith.constant 0 : index
    %c0_32 = arith.constant 0 : index
    %47 = vector.load %arg11[%c0_31, %c0_32] : memref<1x4xf32, #tpu.memory_space<vmem>>, vector<1x4xf32>
    %48 = vector.broadcast %47 : vector<1x4xf32> to vector<16x4xf32>
    %49 = arith.addf %46, %48 : vector<16x4xf32>
    %c0_33 = arith.constant 0 : index
    %c0_34 = arith.constant 0 : index
    %50 = vector.load %arg12[%c0_33, %c0_34] : memref<16x4xf32, #tpu.memory_space<vmem>>, vector<16x4xf32>
    tpu.vector_store %arg12[%c0_33, %c0_34], %49 {strides = array<i32>} : memref<16x4xf32, #tpu.memory_space<vmem>>, vector<16x4xf32>,
    %c0_35 = arith.constant 0 : index
    %c0_36 = arith.constant 0 : index
    %51 = vector.load %arg13[%c0_35, %c0_36] : memref<16x32xf32, #tpu.memory_space<vmem>>, vector<16x32xf32>
    tpu.vector_store %arg13[%c0_35, %c0_36], %15 {strides = array<i32>} : memref<16x32xf32, #tpu.memory_space<vmem>>, vector<16x32xf32>,
    return
  }
  func.func @transform_0(%arg0: i32) -> (i32, i32) {
    %c0_i32 = arith.constant 0 : i32
    %c0_i32_0 = arith.constant 0 : i32
    return %arg0, %c0_i32 : i32, i32
  }
  func.func @transform_1(%arg0: i32) -> (i32, i32) {
    %c0_i32 = arith.constant 0 : i32
    %c0_i32_0 = arith.constant 0 : i32
    return %arg0, %c0_i32 : i32, i32
  }
  func.func @transform_2(%arg0: i32) -> (i32, i32) {
    %c0_i32 = arith.constant 0 : i32
    %c0_i32_0 = arith.constant 0 : i32
    return %arg0, %c0_i32 : i32, i32
  }
  func.func @transform_3(%arg0: i32) -> (i32, i32) {
    %c0_i32 = arith.constant 0 : i32
    %c0_i32_0 = arith.constant 0 : i32
    %c0_i32_1 = arith.constant 0 : i32
    return %c0_i32, %c0_i32_0 : i32, i32
  }
  func.func @transform_4(%arg0: i32) -> (i32, i32) {
    %c0_i32 = arith.constant 0 : i32
    %c0_i32_0 = arith.constant 0 : i32
    %c0_i32_1 = arith.constant 0 : i32
    return %c0_i32, %c0_i32_0 : i32, i32
  }
  func.func @transform_5(%arg0: i32) -> (i32, i32) {
    %c0_i32 = arith.constant 0 : i32
    %c0_i32_0 = arith.constant 0 : i32
    %c0_i32_1 = arith.constant 0 : i32
    return %c0_i32, %c0_i32_0 : i32, i32
  }
  func.func @transform_6(%arg0: i32) -> (i32, i32) {
    %c0_i32 = arith.constant 0 : i32
    %c0_i32_0 = arith.constant 0 : i32
    %c0_i32_1 = arith.constant 0 : i32
    return %c0_i32, %c0_i32_0 : i32, i32
  }
  func.func @transform_7(%arg0: i32) -> (i32, i32) {
    %c0_i32 = arith.constant 0 : i32
    %c0_i32_0 = arith.constant 0 : i32
    %c0_i32_1 = arith.constant 0 : i32
    return %c0_i32, %c0_i32_0 : i32, i32
  }
  func.func @transform_8(%arg0: i32) -> (i32, i32) {
    %c0_i32 = arith.constant 0 : i32
    %c0_i32_0 = arith.constant 0 : i32
    %c0_i32_1 = arith.constant 0 : i32
    return %c0_i32, %c0_i32_0 : i32, i32
  }
  func.func @transform_9(%arg0: i32) -> (i32, i32) {
    %c0_i32 = arith.constant 0 : i32
    %c0_i32_0 = arith.constant 0 : i32
    %c0_i32_1 = arith.constant 0 : i32
    return %c0_i32, %c0_i32_0 : i32, i32
  }
  func.func @transform_10(%arg0: i32) -> (i32, i32) {
    %c0_i32 = arith.constant 0 : i32
    %c0_i32_0 = arith.constant 0 : i32
    %c0_i32_1 = arith.constant 0 : i32
    return %c0_i32, %c0_i32_0 : i32, i32
  }
  func.func @transform_11(%arg0: i32) -> (i32, i32) {
    %c0_i32 = arith.constant 0 : i32
    %c0_i32_0 = arith.constant 0 : i32
    return %arg0, %c0_i32 : i32, i32
  }
  func.func @transform_12(%arg0: i32) -> (i32, i32) {
    %c0_i32 = arith.constant 0 : i32
    %c0_i32_0 = arith.constant 0 : i32
    return %arg0, %c0_i32 : i32, i32
  }
}

</mosaic_0001>

<llo_original>
// kernel: tpu_custom_call.1
$region0: #{tpu_custom_call.1}
  #allocation0 [shape = 'u32[]', space=smem, size = 0x4, offset = 0x4, fixed_abs, tag = 'smem constant byte address 0x4 - core index']
  #allocation1 [shape = 'u32[144,128]{1,0:T(1,128)}', space=vmem, size = 0x12000, scoped, tag = 'internal scratch']
  %s0 = inlined_call_operand.hbm [shape: f32[16,32], index: 0, kind: input, shape index: {}]
  %s1 = inlined_call_operand.hbm [shape: f32[16,16], index: 1, kind: input, shape index: {}]
  %s2 = inlined_call_operand.hbm [shape: f32[16,16], index: 2, kind: input, shape index: {}]
  %s3 = inlined_call_operand.vmem [shape: f32[32,32], index: 3, kind: input, shape index: {}]
  %s4 = inlined_call_operand.vmem [shape: f32[1,32], index: 4, kind: input, shape index: {}]
  %s5 = inlined_call_operand.hbm [shape: f32[32,128], index: 5, kind: input, shape index: {}]
  %s6 = inlined_call_operand.vmem [shape: f32[1,128], index: 6, kind: input, shape index: {}]
  %s7 = inlined_call_operand.hbm [shape: f32[32,32], index: 7, kind: input, shape index: {}]
  %s8 = inlined_call_operand.vmem [shape: f32[1,32], index: 8, kind: input, shape index: {}]
  %s9 = inlined_call_operand.vmem [shape: f32[32,4], index: 9, kind: input, shape index: {}]
  %s10 = inlined_call_operand.vmem [shape: f32[1,4], index: 10, kind: input, shape index: {}]
  %s11 = inlined_call_operand.vmem [shape: f32[16,4], index: 11, kind: output, shape index: {0}]
  %s12 = inlined_call_operand.hbm [shape: f32[16,32], index: 12, kind: output, shape index: {1}]
  %13 = xla_tuple %s11, %s12
  %s14 = sld [smem:[#allocation0]]
  $region82: #{tpu_custom_call.1} parent=0
    _
  %s16 = ssub.s32 1, %s14
  %s17 = scalar_select 0, %s16, %s14
  $region1: #{tpu_custom_call.1} parent=0
    #allocation2 [shape = 'u8[8192]{0}', space=vmem, size = 0x2000, scoped, tag = 'input window, operand 0, single buffered']
    #allocation3 [shape = 's32[1]{0}', space=sflag, size = 0x4, scoped, tag = 'scoped memory for tpu_custom_call.1']
    #allocation4 [shape = 's32[1]{0}', space=sflag, size = 0x4, scoped, tag = 'scoped memory for tpu_custom_call.1']
    #allocation5 [shape = 'u8[8192]{0}', space=vmem, size = 0x2000, scoped, tag = 'input window, operand 1, single buffered']
    #allocation6 [shape = 's32[1]{0}', space=sflag, size = 0x4, scoped, tag = 'scoped memory for tpu_custom_call.1']
    #allocation7 [shape = 'u8[8192]{0}', space=vmem, size = 0x2000, scoped, tag = 'input window, operand 2, single buffered']
    #allocation8 [shape = 'u8[16384]{0}', space=vmem, size = 0x4000, scoped, tag = 'input window, operand 5, single buffered']
    #allocation9 [shape = 's32[1]{0}', space=sflag, size = 0x4, scoped, tag = 'scoped memory for tpu_custom_call.1']
    #allocation10 [shape = 'u8[16384]{0}', space=vmem, size = 0x4000, scoped, tag = 'input window, operand 7, single buffered']
    #allocation11 [shape = 'u8[8192]{0}', space=vmem, size = 0x2000, scoped, tag = 'output window, operand 1, single buffered']
    %18 = vsyncpa [#allocation3], 0
    %19 = vsyncpa [#allocation6], 0
    %20 = vsyncpa [#allocation9], 0
    %21 = vsyncpa [#allocation4], 0
    // Predicated region
    $region2: #{tpu_custom_call.1} parent=1 // pred_check
      _
    $region3: #{tpu_custom_call.1} parent=1 // pred_check_branch
      %23 = sbr.rel (0) target = $region5
    $region4: #{tpu_custom_call.1} parent=1 // pred_region
      %s25 = ssub.s32 256, 256
      %26 = vsyncadd [#allocation3], %s25
      %s27 = sshll.u32 [#allocation2], 4
      %s28 = int_to_ptr.vmem [resolvable:$true] %s27
      %33 = dma.hbm_to_vmem [thread:$0]  %s0, 256, %s28, [#allocation3], 128, 128, 8
    $region5: #{tpu_custom_call.1} parent=1 // pred_fallthru
      _
    // Predicated region
    $region6: #{tpu_custom_call.1} parent=1 // pred_check
      _
    $region7: #{tpu_custom_call.1} parent=1 // pred_check_branch
      %35 = sbr.rel (0) target = $region9
    $region8: #{tpu_custom_call.1} parent=1 // pred_region
      %s37 = ssub.s32 256, 256
      %38 = vsyncadd [#allocation6], %s37
      %s39 = sshll.u32 [#allocation5], 4
      %s40 = int_to_ptr.vmem [resolvable:$true] %s39
      %45 = dma.hbm_to_vmem [thread:$0]  %s1, 256, %s40, [#allocation6], 128, 128, 8
    $region9: #{tpu_custom_call.1} parent=1 // pred_fallthru
      _
    // Predicated region
    $region10: #{tpu_custom_call.1} parent=1 // pred_check
      _
    $region11: #{tpu_custom_call.1} parent=1 // pred_check_branch
      %47 = sbr.rel (0) target = $region13
    $region12: #{tpu_custom_call.1} parent=1 // pred_region
      %s49 = ssub.s32 256, 256
      %50 = vsyncadd [#allocation6], %s49
      %s51 = sshll.u32 [#allocation7], 4
      %s52 = int_to_ptr.vmem [resolvable:$true] %s51
      %57 = dma.hbm_to_vmem [thread:$0]  %s2, 256, %s52, [#allocation6], 128, 128, 8
    $region13: #{tpu_custom_call.1} parent=1 // pred_fallthru
      _
    // Predicated region
    $region14: #{tpu_custom_call.1} parent=1 // pred_check
      _
    $region15: #{tpu_custom_call.1} parent=1 // pred_check_branch
      %59 = sbr.rel (0) target = $region17
    $region16: #{tpu_custom_call.1} parent=1 // pred_region
      _
    $region17: #{tpu_custom_call.1} parent=1 // pred_fallthru
      _
    // Predicated region
    $region18: #{tpu_custom_call.1} parent=1 // pred_check
      _
    $region19: #{tpu_custom_call.1} parent=1 // pred_check_branch
      %61 = sbr.rel (0) target = $region21
    $region20: #{tpu_custom_call.1} parent=1 // pred_region
      _
    $region21: #{tpu_custom_call.1} parent=1 // pred_fallthru
      _
    // Predicated region
    $region22: #{tpu_custom_call.1} parent=1 // pred_check
      _
    $region23: #{tpu_custom_call.1} parent=1 // pred_check_branch
      %63 = sbr.rel (0) target = $region25
    $region24: #{tpu_custom_call.1} parent=1 // pred_region
      %s65 = ssub.s32 512, 512
      %66 = vsyncadd [#allocation9], %s65
      %s67 = sshll.u32 [#allocation8], 4
      %s68 = int_to_ptr.vmem [resolvable:$true] %s67
      %73 = dma.hbm_to_vmem [thread:$0]  %s5, 512, %s68, [#allocation9], 128, 128, 8
    $region25: #{tpu_custom_call.1} parent=1 // pred_fallthru
      _
    // Predicated region
    $region26: #{tpu_custom_call.1} parent=1 // pred_check
      _
    $region27: #{tpu_custom_call.1} parent=1 // pred_check_branch
      %75 = sbr.rel (0) target = $region29
    $region28: #{tpu_custom_call.1} parent=1 // pred_region
      _
    $region29: #{tpu_custom_call.1} parent=1 // pred_fallthru
      _
    // Predicated region
    $region30: #{tpu_custom_call.1} parent=1 // pred_check
      _
    $region31: #{tpu_custom_call.1} parent=1 // pred_check_branch
      %77 = sbr.rel (0) target = $region33
    $region32: #{tpu_custom_call.1} parent=1 // pred_region
      %s79 = ssub.s32 512, 512
      %80 = vsyncadd [#allocation9], %s79
      %s81 = sshll.u32 [#allocation10], 4
      %s82 = int_to_ptr.vmem [resolvable:$true] %s81
      %87 = dma.hbm_to_vmem [thread:$0]  %s7, 512, %s82, [#allocation9], 128, 128, 8
    $region33: #{tpu_custom_call.1} parent=1 // pred_fallthru
      _
    // Predicated region
    $region34: #{tpu_custom_call.1} parent=1 // pred_check
      _
    $region35: #{tpu_custom_call.1} parent=1 // pred_check_branch
      %89 = sbr.rel (0) target = $region37
    $region36: #{tpu_custom_call.1} parent=1 // pred_region
      _
    $region37: #{tpu_custom_call.1} parent=1 // pred_fallthru
      _
    // Predicated region
    $region38: #{tpu_custom_call.1} parent=1 // pred_check
      _
    $region39: #{tpu_custom_call.1} parent=1 // pred_check_branch
      %91 = sbr.rel (0) target = $region41
    $region40: #{tpu_custom_call.1} parent=1 // pred_region
      _
    $region41: #{tpu_custom_call.1} parent=1 // pred_fallthru
      _
    // Predicated region
    $region42: #{tpu_custom_call.1} parent=1 // pred_check
      _
    $region43: #{tpu_custom_call.1} parent=1 // pred_check_branch
      %93 = sbr.rel (0) target = $region45
    $region44: #{tpu_custom_call.1} parent=1 // pred_region
      _
    $region45: #{tpu_custom_call.1} parent=1 // pred_fallthru
      _
    // Predicated region
    $region46: #{tpu_custom_call.1} parent=1 // pred_check
      _
    $region47: #{tpu_custom_call.1} parent=1 // pred_check_branch
      %95 = sbr.rel (0) target = $region49
    $region48: #{tpu_custom_call.1} parent=1 // pred_region
      %96 = dma.done [#allocation3], 256
    $region49: #{tpu_custom_call.1} parent=1 // pred_fallthru
      _
    // Predicated region
    $region50: #{tpu_custom_call.1} parent=1 // pred_check
      _
    $region51: #{tpu_custom_call.1} parent=1 // pred_check_branch
      %98 = sbr.rel (0) target = $region53
    $region52: #{tpu_custom_call.1} parent=1 // pred_region
      %99 = dma.done [#allocation6], 256
    $region53: #{tpu_custom_call.1} parent=1 // pred_fallthru
      _
    // Predicated region
    $region54: #{tpu_custom_call.1} parent=1 // pred_check
      _
    $region55: #{tpu_custom_call.1} parent=1 // pred_check_branch
      %101 = sbr.rel (0) target = $region57
    $region56: #{tpu_custom_call.1} parent=1 // pred_region
      %102 = dma.done [#allocation6], 256
    $region57: #{tpu_custom_call.1} parent=1 // pred_fallthru
      _
    // Predicated region
    $region58: #{tpu_custom_call.1} parent=1 // pred_check
      _
    $region59: #{tpu_custom_call.1} parent=1 // pred_check_branch
      %104 = sbr.rel (0) target = $region61
    $region60: #{tpu_custom_call.1} parent=1 // pred_region
      %105 = dma.done [#allocation9], 512
    $region61: #{tpu_custom_call.1} parent=1 // pred_fallthru
      _
    // Predicated region
    $region62: #{tpu_custom_call.1} parent=1 // pred_check
      _
    $region63: #{tpu_custom_call.1} parent=1 // pred_check_branch
      %107 = sbr.rel (0) target = $region65
    $region64: #{tpu_custom_call.1} parent=1 // pred_region
      %108 = dma.done [#allocation9], 512
    $region65: #{tpu_custom_call.1} parent=1 // pred_fallthru
      _
    %v109 = vld [vmem:[#allocation2] sm:$0xff]
    %v110 = vld [vmem:[#allocation2 + $0x8] sm:$0xff]
    %v111 = vld [vmem:[#allocation5] sm:$0xff]
    %v112 = vld [vmem:[#allocation5 + $0x8] sm:$0xff]
    %v113 = vld [vmem:[#allocation7] sm:$0xff]
    %v114 = vld [vmem:[#allocation7 + $0x8] sm:$0xff]
    %v115 = vld [vmem:[%s3] sm:$0xff]
    %v116 = vld [vmem:[%s3 + $0x8] sm:$0xff]
    %v117 = vld [vmem:[%s3 + $0x10] sm:$0xff]
    %v118 = vld [vmem:[%s3 + $0x18] sm:$0xff]
    %v119 = vld [vmem:[%s4] sm:$0x1]
    %v121 = vlaneseq
    %v122 = vshrl.u32 %v121, 7
    %v123 = vsub.s32 0, %v122
    %v124 = vrot.slane %v119, %v123
    %vm126 = vcmask 261120
    %v128 = vsel %vm126, %v109, 0
    %v131 = vsel %vm126, %v110, 0
    %133 = vmatprep.subr.mxu0 0.0
    %134 = vmatpush1.msra.mxu0 %v115
    %135 = vmatprep.subr.mxu0 0.0
    %136 = vmatpush1.msra.mxu0 %v116
    %137 = vmatprep.subr.mxu0 0.0
    %138 = vmatpush1.msra.mxu0 %v117
    %139 = vmatprep.subr.mxu0 0.0
    %140 = vmatpush1.msra.mxu0 %v118
    %141 = vmatprep.subr.mxu0 0.0
    %142 = vmatpush1.msra.mxu0 0.0
    %143 = vmatprep.subr.mxu0 0.0
    %144 = vmatpush1.msra.mxu0 0.0
    %145 = vmatprep.subr.mxu0 0.0
    %146 = vmatpush1.msra.mxu0 0.0
    %147 = vmatprep.subr.mxu0 0.0
    %148 = vmatpush1.msra.mxu0 0.0
    %149 = vmatprep.subr.mxu0 0.0
    %150 = vmatpush1.msra.mxu0 0.0
    %151 = vmatprep.subr.mxu0 0.0
    %152 = vmatpush1.msra.mxu0 0.0
    %153 = vmatprep.subr.mxu0 0.0
    %154 = vmatpush1.msra.mxu0 0.0
    %155 = vmatprep.subr.mxu0 0.0
    %156 = vmatpush1.msra.mxu0 0.0
    %157 = vmatprep.subr.mxu0 0.0
    %158 = vmatpush1.msra.mxu0 0.0
    %159 = vmatprep.subr.mxu0 0.0
    %160 = vmatpush1.msra.mxu0 0.0
    %161 = vmatprep.subr.mxu0 0.0
    %162 = vmatpush1.msra.mxu0 0.0
    %163 = vmatprep.subr.mxu0 0.0
    %164 = vmatpush1.msra.mxu0 0.0
    %165 = vmatprep.subr.mxu0 0.0
    %166 = vmatpush1.msra.mxu0 0.0
    %167 = vmatprep.subr.mxu0 0.0
    %168 = vmatpush1.msra.mxu0 0.0
    %169 = vmatprep.subr.mxu0 0.0
    %170 = vmatpush1.msra.mxu0 0.0
    %171 = vmatprep.subr.mxu0 0.0
    %172 = vmatpush1.msra.mxu0 0.0
    %173 = vmatprep.subr.mxu0 0.0
    %174 = vmatpush1.msra.mxu0 0.0
    %175 = vmatprep.subr.mxu0 0.0
    %176 = vmatpush1.msra.mxu0 0.0
    %177 = vmatprep.subr.mxu0 0.0
    %178 = vmatpush1.msra.mxu0 0.0
    %179 = vmatprep.subr.mxu0 0.0
    %180 = vmatpush1.msra.mxu0 0.0
    %181 = vmatprep.subr.mxu0 0.0
    %182 = vmatpush1.msra.mxu0 0.0
    %183 = vmatprep.subr.mxu0 0.0
    %184 = vmatpush1.msra.mxu0 0.0
    %185 = vmatprep.subr.mxu0 0.0
    %186 = vmatpush1.msra.mxu0 0.0
    %187 = vmatprep.subr.mxu0 0.0
    %188 = vmatpush1.msra.mxu0 0.0
    %189 = vmatprep.subr.mxu0 0.0
    %190 = vmatpush1.msra.mxu0 0.0
    %191 = vmatprep.subr.mxu0 0.0
    %192 = vmatpush1.msra.mxu0 0.0
    %193 = vmatprep.subr.mxu0 0.0
    %194 = vmatpush1.msra.mxu0 0.0
    %195 = vmatprep.subr.mxu0 0.0
    %196 = vmatpush1.msra.mxu0 0.0
    %197 = vmatprep.mubr.f32.mxu0 0.0
    %198 = vmatmul.mubr.f32.gmra.mrb[0].mxu0 %v128
    %v199 = vpop.f32.mrb[0].mxu0
    %v200 = vadd.f32 %v124, %v199
    %v201 = vpop.f32.mrb[0].mxu0
    %202 = vmatprep.mubr.f32.mxu0 0.0
    %203 = vmatmul.mubr.f32.gmra.mrb[0].mxu0 %v131
    %v204 = vpop.f32.mrb[0].mxu0
    %v205 = vadd.f32 %v124, %v204
    %v206 = vpop.f32.mrb[0].mxu0
    %207 = vdwg.mxu0
    %v208 = vmax.f32 %v200, 0.0
    %v209 = vmax.f32 %v205, 0.0
    %v210 = vld [vmem:[#allocation8] sm:$0xff]
    %v211 = vld [vmem:[#allocation8 + $0x8] sm:$0xff]
    %v212 = vld [vmem:[#allocation8 + $0x10] sm:$0xff]
    %v213 = vld [vmem:[#allocation8 + $0x18] sm:$0xff]
    %v214 = vld [vmem:[%s6] sm:$0x1]
    %v216 = vlaneseq
    %v217 = vshrl.u32 %v216, 7
    %v218 = vsub.s32 0, %v217
    %v219 = vrot.slane %v214, %v218
    %v222 = vsel %vm126, %v208, 0
    %v225 = vsel %vm126, %v209, 0
    %227 = vmatprep.subr.mxu0 0.0
    %228 = vmatpush1.msra.mxu0 %v210
    %229 = vmatprep.subr.mxu0 0.0
    %230 = vmatpush1.msra.mxu0 %v211
    %231 = vmatprep.subr.mxu0 0.0
    %232 = vmatpush1.msra.mxu0 %v212
    %233 = vmatprep.subr.mxu0 0.0
    %234 = vmatpush1.msra.mxu0 %v213
    %235 = vmatprep.subr.mxu0 0.0
    %236 = vmatpush1.msra.mxu0 0.0
    %237 = vmatprep.subr.mxu0 0.0
    %238 = vmatpush1.msra.mxu0 0.0
    %239 = vmatprep.subr.mxu0 0.0
    %240 = vmatpush1.msra.mxu0 0.0
    %241 = vmatprep.subr.mxu0 0.0
    %242 = vmatpush1.msra.mxu0 0.0
    %243 = vmatprep.subr.mxu0 0.0
    %244 = vmatpush1.msra.mxu0 0.0
    %245 = vmatprep.subr.mxu0 0.0
    %246 = vmatpush1.msra.mxu0 0.0
    %247 = vmatprep.subr.mxu0 0.0
    %248 = vmatpush1.msra.mxu0 0.0
    %249 = vmatprep.subr.mxu0 0.0
    %250 = vmatpush1.msra.mxu0 0.0
    %251 = vmatprep.subr.mxu0 0.0
    %252 = vmatpush1.msra.mxu0 0.0
    %253 = vmatprep.subr.mxu0 0.0
    %254 = vmatpush1.msra.mxu0 0.0
    %255 = vmatprep.subr.mxu0 0.0
    %256 = vmatpush1.msra.mxu0 0.0
    %257 = vmatprep.subr.mxu0 0.0
    %258 = vmatpush1.msra.mxu0 0.0
    %259 = vmatprep.subr.mxu0 0.0
    %260 = vmatpush1.msra.mxu0 0.0
    %261 = vmatprep.subr.mxu0 0.0
    %262 = vmatpush1.msra.mxu0 0.0
    %263 = vmatprep.subr.mxu0 0.0
    %264 = vmatpush1.msra.mxu0 0.0
    %265 = vmatprep.subr.mxu0 0.0
    %266 = vmatpush1.msra.mxu0 0.0
    %267 = vmatprep.subr.mxu0 0.0
    %268 = vmatpush1.msra.mxu0 0.0
    %269 = vmatprep.subr.mxu0 0.0
    %270 = vmatpush1.msra.mxu0 0.0
    %271 = vmatprep.subr.mxu0 0.0
    %272 = vmatpush1.msra.mxu0 0.0
    %273 = vmatprep.subr.mxu0 0.0
    %274 = vmatpush1.msra.mxu0 0.0
    %275 = vmatprep.subr.mxu0 0.0
    %276 = vmatpush1.msra.mxu0 0.0
    %277 = vmatprep.subr.mxu0 0.0
    %278 = vmatpush1.msra.mxu0 0.0
    %279 = vmatprep.subr.mxu0 0.0
    %280 = vmatpush1.msra.mxu0 0.0
    %281 = vmatprep.subr.mxu0 0.0
    %282 = vmatpush1.msra.mxu0 0.0
    %283 = vmatprep.subr.mxu0 0.0
    %284 = vmatpush1.msra.mxu0 0.0
    %285 = vmatprep.subr.mxu0 0.0
    %286 = vmatpush1.msra.mxu0 0.0
    %287 = vmatprep.subr.mxu0 0.0
    %288 = vmatpush1.msra.mxu0 0.0
    %289 = vmatprep.subr.mxu0 0.0
    %290 = vmatpush1.msra.mxu0 0.0
    %291 = vmatprep.mubr.f32.mxu0 0.0
    %292 = vmatmul.mubr.f32.gmra.mrb[0].mxu0 %v222
    %v293 = vpop.f32.mrb[0].mxu0
    %v294 = vadd.f32 %v219, %v293
    %v295 = vpop.f32.mrb[0].mxu0
    %296 = vmatprep.mubr.f32.mxu0 0.0
    %297 = vmatmul.mubr.f32.gmra.mrb[0].mxu0 %v225
    %v298 = vpop.f32.mrb[0].mxu0
    %v299 = vadd.f32 %v219, %v298
    %v300 = vpop.f32.mrb[0].mxu0
    %301 = vdwg.mxu0
    %v302 = vmax.f32 %v294, 0.0
    %v303 = vmax.f32 %v299, 0.0
    %306 = vrot.lane.b32.xlu0 %v302, 64
    %v307 = vpop.permute.xlu0 %306
    %308 = vrot.lane.b32.xlu0 %v303, 64
    %v309 = vpop.permute.xlu0 %308
    %310 = vrot.lane.b32.xlu0 %v302, 32
    %v311 = vpop.permute.xlu0 %310
    %312 = vrot.lane.b32.xlu0 %v303, 32
    %v313 = vpop.permute.xlu0 %312
    %v314 = vsel %vm126, %v307, 0
    %v316 = vsel %vm126, %v309, 0
    %v318 = vsel %vm126, %v311, 0
    %v320 = vsel %vm126, %v313, 0
    %322 = vmatprep.subr.mxu0 0.0
    %323 = vmatpush1.xpose.msra.mxu0 %v318
    %324 = vmatprep.subr.mxu0 0.0
    %325 = vmatpush1.xpose.msra.mxu0 %v320
    %326 = vmatprep.subr.mxu0 0.0
    %327 = vmatpush1.xpose.msra.mxu0 0.0
    %328 = vmatprep.subr.mxu0 0.0
    %329 = vmatpush1.xpose.msra.mxu0 0.0
    %330 = vmatprep.subr.mxu0 0.0
    %331 = vmatpush1.xpose.msra.mxu0 0.0
    %332 = vmatprep.subr.mxu0 0.0
    %333 = vmatpush1.xpose.msra.mxu0 0.0
    %334 = vmatprep.subr.mxu0 0.0
    %335 = vmatpush1.xpose.msra.mxu0 0.0
    %336 = vmatprep.subr.mxu0 0.0
    %337 = vmatpush1.xpose.msra.mxu0 0.0
    %338 = vmatprep.subr.mxu0 0.0
    %339 = vmatpush1.xpose.msra.mxu0 0.0
    %340 = vmatprep.subr.mxu0 0.0
    %341 = vmatpush1.xpose.msra.mxu0 0.0
    %342 = vmatprep.subr.mxu0 0.0
    %343 = vmatpush1.xpose.msra.mxu0 0.0
    %344 = vmatprep.subr.mxu0 0.0
    %345 = vmatpush1.xpose.msra.mxu0 0.0
    %346 = vmatprep.subr.mxu0 0.0
    %347 = vmatpush1.xpose.msra.mxu0 0.0
    %348 = vmatprep.subr.mxu0 0.0
    %349 = vmatpush1.xpose.msra.mxu0 0.0
    %350 = vmatprep.subr.mxu0 0.0
    %351 = vmatpush1.xpose.msra.mxu0 0.0
    %352 = vmatprep.subr.mxu0 0.0
    %353 = vmatpush1.xpose.msra.mxu0 0.0
    %354 = vmatprep.subr.mxu0 0.0
    %355 = vmatpush1.xpose.msra.mxu0 0.0
    %356 = vmatprep.subr.mxu0 0.0
    %357 = vmatpush1.xpose.msra.mxu0 0.0
    %358 = vmatprep.subr.mxu0 0.0
    %359 = vmatpush1.xpose.msra.mxu0 0.0
    %360 = vmatprep.subr.mxu0 0.0
    %361 = vmatpush1.xpose.msra.mxu0 0.0
    %362 = vmatprep.subr.mxu0 0.0
    %363 = vmatpush1.xpose.msra.mxu0 0.0
    %364 = vmatprep.subr.mxu0 0.0
    %365 = vmatpush1.xpose.msra.mxu0 0.0
    %366 = vmatprep.subr.mxu0 0.0
    %367 = vmatpush1.xpose.msra.mxu0 0.0
    %368 = vmatprep.subr.mxu0 0.0
    %369 = vmatpush1.xpose.msra.mxu0 0.0
    %370 = vmatprep.subr.mxu0 0.0
    %371 = vmatpush1.xpose.msra.mxu0 0.0
    %372 = vmatprep.subr.mxu0 0.0
    %373 = vmatpush1.xpose.msra.mxu0 0.0
    %374 = vmatprep.subr.mxu0 0.0
    %375 = vmatpush1.xpose.msra.mxu0 0.0
    %376 = vmatprep.subr.mxu0 0.0
    %377 = vmatpush1.xpose.msra.mxu0 0.0
    %378 = vmatprep.subr.mxu0 0.0
    %379 = vmatpush1.xpose.msra.mxu0 0.0
    %380 = vmatprep.subr.mxu0 0.0
    %381 = vmatpush1.xpose.msra.mxu0 0.0
    %382 = vmatprep.subr.mxu0 0.0
    %383 = vmatpush1.xpose.msra.mxu0 0.0
    %384 = vmatprep.subr.mxu0 0.0
    %385 = vmatpush1.xpose.msra.mxu0 0.0
    %386 = vmatprep.mubr.f32.mxu0 0.0
    %387 = vmatmul.mubr.f32.gmra.mrb[0].mxu0 %v314
    %v388 = vpop.f32.mrb[0].mxu0
    %v389 = vadd.f32 0.0, %v388
    %v390 = vpop.f32.mrb[0].mxu0
    %391 = vmatprep.mubr.f32.mxu0 0.0
    %392 = vmatmul.mubr.f32.gmra.mrb[0].mxu0 %v316
    %v393 = vpop.f32.mrb[0].mxu0
    %v394 = vadd.f32 0.0, %v393
    %v395 = vpop.f32.mrb[0].mxu0
    %396 = vdwg.mxu0
    %v397 = vmul.f32 %v389, %v111
    %v398 = vmul.f32 %v394, %v112
    %v399 = vadd.f32 %v397, %v113
    %v400 = vadd.f32 %v398, %v114
    %vm401 = vcmask 130048
    %v402 = vsel %vm401, %v399, -inf
    %403 = vmax.xlane.f32.xlu0 %v402
    %v404 = vpop.xlane.xlu0 %403
    %v405 = vsel %vm401, %v400, -inf
    %406 = vmax.xlane.f32.xlu0 %v405
    %v407 = vpop.xlane.xlu0 %406
    %v408 = vsub.f32 %v399, %v404
    %v409 = vsub.f32 %v400, %v407
    %v410 = vmul.f32 %v408, 1.442695
    %v411 = vpow.pop %v410
    %v412 = vmul.f32 %v409, 1.442695
    %v413 = vpow.pop %v412
    %v414 = vsel %vm401, %v411, 0.0
    %415 = vadd.xlane.f32.xlu0 %v414
    %v416 = vpop.xlane.xlu0 %415
    %v417 = vsel %vm401, %v413, 0.0
    %418 = vadd.xlane.f32.xlu0 %v417
    %v419 = vpop.xlane.xlu0 %418
    %v420 = vrcp.pop %v416
    %v421 = vmul.f32 %v411, %v420
    %v422 = vrcp.pop %v419
    %v423 = vmul.f32 %v413, %v422
    %424 = vrot.lane.b32.xlu0 %v302, 96
    %v425 = vpop.permute.xlu0 %424
    %426 = vrot.lane.b32.xlu0 %v303, 96
    %v427 = vpop.permute.xlu0 %426
    %v431 = vsel %vm401, %v421, 0
    %v434 = vsel %vm401, %v423, 0
    %436 = vmatprep.subr.mxu0 0.0
    %437 = vmatpush1.msra.mxu0 %v425
    %438 = vmatprep.subr.mxu0 0.0
    %439 = vmatpush1.msra.mxu0 %v427
    %440 = vmatprep.subr.mxu0 0.0
    %441 = vmatpush1.msra.mxu0 0.0
    %442 = vmatprep.subr.mxu0 0.0
    %443 = vmatpush1.msra.mxu0 0.0
    %444 = vmatprep.subr.mxu0 0.0
    %445 = vmatpush1.msra.mxu0 0.0
    %446 = vmatprep.subr.mxu0 0.0
    %447 = vmatpush1.msra.mxu0 0.0
    %448 = vmatprep.subr.mxu0 0.0
    %449 = vmatpush1.msra.mxu0 0.0
    %450 = vmatprep.subr.mxu0 0.0
    %451 = vmatpush1.msra.mxu0 0.0
    %452 = vmatprep.subr.mxu0 0.0
    %453 = vmatpush1.msra.mxu0 0.0
    %454 = vmatprep.subr.mxu0 0.0
    %455 = vmatpush1.msra.mxu0 0.0
    %456 = vmatprep.subr.mxu0 0.0
    %457 = vmatpush1.msra.mxu0 0.0
    %458 = vmatprep.subr.mxu0 0.0
    %459 = vmatpush1.msra.mxu0 0.0
    %460 = vmatprep.subr.mxu0 0.0
    %461 = vmatpush1.msra.mxu0 0.0
    %462 = vmatprep.subr.mxu0 0.0
    %463 = vmatpush1.msra.mxu0 0.0
    %464 = vmatprep.subr.mxu0 0.0
    %465 = vmatpush1.msra.mxu0 0.0
    %466 = vmatprep.subr.mxu0 0.0
    %467 = vmatpush1.msra.mxu0 0.0
    %468 = vmatprep.subr.mxu0 0.0
    %469 = vmatpush1.msra.mxu0 0.0
    %470 = vmatprep.subr.mxu0 0.0
    %471 = vmatpush1.msra.mxu0 0.0
    %472 = vmatprep.subr.mxu0 0.0
    %473 = vmatpush1.msra.mxu0 0.0
    %474 = vmatprep.subr.mxu0 0.0
    %475 = vmatpush1.msra.mxu0 0.0
    %476 = vmatprep.subr.mxu0 0.0
    %477 = vmatpush1.msra.mxu0 0.0
    %478 = vmatprep.subr.mxu0 0.0
    %479 = vmatpush1.msra.mxu0 0.0
    %480 = vmatprep.subr.mxu0 0.0
    %481 = vmatpush1.msra.mxu0 0.0
    %482 = vmatprep.subr.mxu0 0.0
    %483 = vmatpush1.msra.mxu0 0.0
    %484 = vmatprep.subr.mxu0 0.0
    %485 = vmatpush1.msra.mxu0 0.0
    %486 = vmatprep.subr.mxu0 0.0
    %487 = vmatpush1.msra.mxu0 0.0
    %488 = vmatprep.subr.mxu0 0.0
    %489 = vmatpush1.msra.mxu0 0.0
    %490 = vmatprep.subr.mxu0 0.0
    %491 = vmatpush1.msra.mxu0 0.0
    %492 = vmatprep.subr.mxu0 0.0
    %493 = vmatpush1.msra.mxu0 0.0
    %494 = vmatprep.subr.mxu0 0.0
    %495 = vmatpush1.msra.mxu0 0.0
    %496 = vmatprep.subr.mxu0 0.0
    %497 = vmatpush1.msra.mxu0 0.0
    %498 = vmatprep.subr.mxu0 0.0
    %499 = vmatpush1.msra.mxu0 0.0
    %500 = vmatprep.mubr.f32.mxu0 0.0
    %501 = vmatmul.mubr.f32.gmra.mrb[0].mxu0 %v431
    %v502 = vpop.f32.mrb[0].mxu0
    %v503 = vadd.f32 0.0, %v502
    %v504 = vpop.f32.mrb[0].mxu0
    %505 = vmatprep.mubr.f32.mxu0 0.0
    %506 = vmatmul.mubr.f32.gmra.mrb[0].mxu0 %v434
    %v507 = vpop.f32.mrb[0].mxu0
    %v508 = vadd.f32 0.0, %v507
    %v509 = vpop.f32.mrb[0].mxu0
    %510 = vdwg.mxu0
    %v511 = vld [vmem:[#allocation10] sm:$0xff]
    %v512 = vld [vmem:[#allocation10 + $0x8] sm:$0xff]
    %v513 = vld [vmem:[#allocation10 + $0x10] sm:$0xff]
    %v514 = vld [vmem:[#allocation10 + $0x18] sm:$0xff]
    %v515 = vld [vmem:[%s8] sm:$0x1]
    %v517 = vlaneseq
    %v518 = vshrl.u32 %v517, 7
    %v519 = vsub.s32 0, %v518
    %v520 = vrot.slane %v515, %v519
    %v523 = vsel %vm126, %v503, 0
    %v526 = vsel %vm126, %v508, 0
    %528 = vmatprep.subr.mxu0 0.0
    %529 = vmatpush1.msra.mxu0 %v511
    %530 = vmatprep.subr.mxu0 0.0
    %531 = vmatpush1.msra.mxu0 %v512
    %532 = vmatprep.subr.mxu0 0.0
    %533 = vmatpush1.msra.mxu0 %v513
    %534 = vmatprep.subr.mxu0 0.0
    %535 = vmatpush1.msra.mxu0 %v514
    %536 = vmatprep.subr.mxu0 0.0
    %537 = vmatpush1.msra.mxu0 0.0
    %538 = vmatprep.subr.mxu0 0.0
    %539 = vmatpush1.msra.mxu0 0.0
    %540 = vmatprep.subr.mxu0 0.0
    %541 = vmatpush1.msra.mxu0 0.0
    %542 = vmatprep.subr.mxu0 0.0
    %543 = vmatpush1.msra.mxu0 0.0
    %544 = vmatprep.subr.mxu0 0.0
    %545 = vmatpush1.msra.mxu0 0.0
    %546 = vmatprep.subr.mxu0 0.0
    %547 = vmatpush1.msra.mxu0 0.0
    %548 = vmatprep.subr.mxu0 0.0
    %549 = vmatpush1.msra.mxu0 0.0
    %550 = vmatprep.subr.mxu0 0.0
    %551 = vmatpush1.msra.mxu0 0.0
    %552 = vmatprep.subr.mxu0 0.0
    %553 = vmatpush1.msra.mxu0 0.0
    %554 = vmatprep.subr.mxu0 0.0
    %555 = vmatpush1.msra.mxu0 0.0
    %556 = vmatprep.subr.mxu0 0.0
    %557 = vmatpush1.msra.mxu0 0.0
    %558 = vmatprep.subr.mxu0 0.0
    %559 = vmatpush1.msra.mxu0 0.0
    %560 = vmatprep.subr.mxu0 0.0
    %561 = vmatpush1.msra.mxu0 0.0
    %562 = vmatprep.subr.mxu0 0.0
    %563 = vmatpush1.msra.mxu0 0.0
    %564 = vmatprep.subr.mxu0 0.0
    %565 = vmatpush1.msra.mxu0 0.0
    %566 = vmatprep.subr.mxu0 0.0
    %567 = vmatpush1.msra.mxu0 0.0
    %568 = vmatprep.subr.mxu0 0.0
    %569 = vmatpush1.msra.mxu0 0.0
    %570 = vmatprep.subr.mxu0 0.0
    %571 = vmatpush1.msra.mxu0 0.0
    %572 = vmatprep.subr.mxu0 0.0
    %573 = vmatpush1.msra.mxu0 0.0
    %574 = vmatprep.subr.mxu0 0.0
    %575 = vmatpush1.msra.mxu0 0.0
    %576 = vmatprep.subr.mxu0 0.0
    %577 = vmatpush1.msra.mxu0 0.0
    %578 = vmatprep.subr.mxu0 0.0
    %579 = vmatpush1.msra.mxu0 0.0
    %580 = vmatprep.subr.mxu0 0.0
    %581 = vmatpush1.msra.mxu0 0.0
    %582 = vmatprep.subr.mxu0 0.0
    %583 = vmatpush1.msra.mxu0 0.0
    %584 = vmatprep.subr.mxu0 0.0
    %585 = vmatpush1.msra.mxu0 0.0
    %586 = vmatprep.subr.mxu0 0.0
    %587 = vmatpush1.msra.mxu0 0.0
    %588 = vmatprep.subr.mxu0 0.0
    %589 = vmatpush1.msra.mxu0 0.0
    %590 = vmatprep.subr.mxu0 0.0
    %591 = vmatpush1.msra.mxu0 0.0
    %592 = vmatprep.mubr.f32.mxu0 0.0
    %593 = vmatmul.mubr.f32.gmra.mrb[0].mxu0 %v523
    %v594 = vpop.f32.mrb[0].mxu0
    %v595 = vadd.f32 %v520, %v594
    %v596 = vpop.f32.mrb[0].mxu0
    %597 = vmatprep.mubr.f32.mxu0 0.0
    %598 = vmatmul.mubr.f32.gmra.mrb[0].mxu0 %v526
    %v599 = vpop.f32.mrb[0].mxu0
    %v600 = vadd.f32 %v520, %v599
    %v601 = vpop.f32.mrb[0].mxu0
    %602 = vdwg.mxu0
    %v603 = vmax.f32 %v595, 0.0
    %v604 = vmax.f32 %v600, 0.0
    %v605 = vld [vmem:[%s9] sm:$0xff]
    %v606 = vld [vmem:[%s9 + $0x8] sm:$0xff]
    %v607 = vld [vmem:[%s9 + $0x10] sm:$0xff]
    %v608 = vld [vmem:[%s9 + $0x18] sm:$0xff]
    %v609 = vld [vmem:[%s10] sm:$0x1]
    %v611 = vlaneseq
    %v612 = vshrl.u32 %v611, 7
    %v613 = vsub.s32 0, %v612
    %v614 = vrot.slane %v609, %v613
    %v617 = vsel %vm126, %v603, 0
    %v620 = vsel %vm126, %v604, 0
    %622 = vmatprep.subr.mxu0 0.0
    %623 = vmatpush1.msra.mxu0 %v605
    %624 = vmatprep.subr.mxu0 0.0
    %625 = vmatpush1.msra.mxu0 %v606
    %626 = vmatprep.subr.mxu0 0.0
    %627 = vmatpush1.msra.mxu0 %v607
    %628 = vmatprep.subr.mxu0 0.0
    %629 = vmatpush1.msra.mxu0 %v608
    %630 = vmatprep.subr.mxu0 0.0
    %631 = vmatpush1.msra.mxu0 0.0
    %632 = vmatprep.subr.mxu0 0.0
    %633 = vmatpush1.msra.mxu0 0.0
    %634 = vmatprep.subr.mxu0 0.0
    %635 = vmatpush1.msra.mxu0 0.0
    %636 = vmatprep.subr.mxu0 0.0
    %637 = vmatpush1.msra.mxu0 0.0
    %638 = vmatprep.subr.mxu0 0.0
    %639 = vmatpush1.msra.mxu0 0.0
    %640 = vmatprep.subr.mxu0 0.0
    %641 = vmatpush1.msra.mxu0 0.0
    %642 = vmatprep.subr.mxu0 0.0
    %643 = vmatpush1.msra.mxu0 0.0
    %644 = vmatprep.subr.mxu0 0.0
    %645 = vmatpush1.msra.mxu0 0.0
    %646 = vmatprep.subr.mxu0 0.0
    %647 = vmatpush1.msra.mxu0 0.0
    %648 = vmatprep.subr.mxu0 0.0
    %649 = vmatpush1.msra.mxu0 0.0
    %650 = vmatprep.subr.mxu0 0.0
    %651 = vmatpush1.msra.mxu0 0.0
    %652 = vmatprep.subr.mxu0 0.0
    %653 = vmatpush1.msra.mxu0 0.0
    %654 = vmatprep.subr.mxu0 0.0
    %655 = vmatpush1.msra.mxu0 0.0
    %656 = vmatprep.subr.mxu0 0.0
    %657 = vmatpush1.msra.mxu0 0.0
    %658 = vmatprep.subr.mxu0 0.0
    %659 = vmatpush1.msra.mxu0 0.0
    %660 = vmatprep.subr.mxu0 0.0
    %661 = vmatpush1.msra.mxu0 0.0
    %662 = vmatprep.subr.mxu0 0.0
    %663 = vmatpush1.msra.mxu0 0.0
    %664 = vmatprep.subr.mxu0 0.0
    %665 = vmatpush1.msra.mxu0 0.0
    %666 = vmatprep.subr.mxu0 0.0
    %667 = vmatpush1.msra.mxu0 0.0
    %668 = vmatprep.subr.mxu0 0.0
    %669 = vmatpush1.msra.mxu0 0.0
    %670 = vmatprep.subr.mxu0 0.0
    %671 = vmatpush1.msra.mxu0 0.0
    %672 = vmatprep.subr.mxu0 0.0
    %673 = vmatpush1.msra.mxu0 0.0
    %674 = vmatprep.subr.mxu0 0.0
    %675 = vmatpush1.msra.mxu0 0.0
    %676 = vmatprep.subr.mxu0 0.0
    %677 = vmatpush1.msra.mxu0 0.0
    %678 = vmatprep.subr.mxu0 0.0
    %679 = vmatpush1.msra.mxu0 0.0
    %680 = vmatprep.subr.mxu0 0.0
    %681 = vmatpush1.msra.mxu0 0.0
    %682 = vmatprep.subr.mxu0 0.0
    %683 = vmatpush1.msra.mxu0 0.0
    %684 = vmatprep.subr.mxu0 0.0
    %685 = vmatpush1.msra.mxu0 0.0
    %686 = vmatprep.mubr.f32.mxu0 0.0
    %687 = vmatmul.mubr.f32.gmra.mrb[0].mxu0 %v617
    %v688 = vpop.f32.mrb[0].mxu0
    %v689 = vadd.f32 %v614, %v688
    %v690 = vpop.f32.mrb[0].mxu0
    %691 = vmatprep.mubr.f32.mxu0 0.0
    %692 = vmatmul.mubr.f32.gmra.mrb[0].mxu0 %v620
    %v693 = vpop.f32.mrb[0].mxu0
    %v694 = vadd.f32 %v614, %v693
    %v695 = vpop.f32.mrb[0].mxu0
    %696 = vdwg.mxu0
    %vm697 = vcmask 31744
    %698 = vst.msk [vmem:[%s11] sm:$0xff] %vm697, %v689
    %699 = vst.msk [vmem:[%s11 + $0x8] sm:$0xff] %vm697, %v694
    %700 = vst.msk [vmem:[#allocation11] sm:$0xff] %vm126, %v294
    %701 = vst.msk [vmem:[#allocation11 + $0x8] sm:$0xff] %vm126, %v299
    // Predicated region
    $region66: #{tpu_custom_call.1} parent=1 // pred_check
      _
    $region67: #{tpu_custom_call.1} parent=1 // pred_check_branch
      %703 = sbr.rel (0) target = $region69
    $region68: #{tpu_custom_call.1} parent=1 // pred_region
      _
    $region69: #{tpu_custom_call.1} parent=1 // pred_fallthru
      _
    // Predicated region
    $region70: #{tpu_custom_call.1} parent=1 // pred_check
      _
    $region71: #{tpu_custom_call.1} parent=1 // pred_check_branch
      %705 = sbr.rel (0) target = $region73
    $region72: #{tpu_custom_call.1} parent=1 // pred_region
      %s707 = ssub.s32 256, 256
      %708 = vsyncadd [#allocation4], %s707
      %s709 = sshll.u32 [#allocation11], 4
      %s710 = int_to_ptr.vmem [resolvable:$true] %s709
      %715 = dma.vmem_to_hbm [thread:$0]  %s710, 256, %s12, [#allocation4], 128, 128, 8
    $region73: #{tpu_custom_call.1} parent=1 // pred_fallthru
      _
    // Predicated region
    $region74: #{tpu_custom_call.1} parent=1 // pred_check
      _
    $region75: #{tpu_custom_call.1} parent=1 // pred_check_branch
      %717 = sbr.rel (0) target = $region77
    $region76: #{tpu_custom_call.1} parent=1 // pred_region
      _
    $region77: #{tpu_custom_call.1} parent=1 // pred_fallthru
      _
    // Predicated region
    $region78: #{tpu_custom_call.1} parent=1 // pred_check
      _
    $region79: #{tpu_custom_call.1} parent=1 // pred_check_branch
      %719 = sbr.rel (0) target = $region81
    $region80: #{tpu_custom_call.1} parent=1 // pred_region
      %720 = dma.done [#allocation4], 256
    $region81: #{tpu_custom_call.1} parent=1 // pred_fallthru
      _
    %721 = vsyncpa [#allocation3], 1
    %722 = vsyncpa [#allocation6], 1
    %723 = vsyncpa [#allocation9], 1
    %724 = vsyncpa [#allocation4], 1

</llo_original>
